<compile_context>
chip_gen: v7x
topology: tpu7x:2x2x1
jax: 0.10.0
libtpu: 0.0.40
codegen_flags: <defaults>
</compile_context>

<pallas_src>
import functools

import jax
import jax.numpy as jnp
from jax.experimental import pallas as pl
from jax.experimental.pallas import tpu as pltpu

HIDDEN = 64          # fc1 output / fc2 input width (fixed by the module)
SLAB = 128           # batch rows per fused inner-loop step (h slab = [128, 64] f32)


def value_net_kernel(x_ref, w1_ref, b1_ref, w2_ref, b2_ref, o_ref):
    H = w1_ref.shape[1]
    n_slab = x_ref.shape[0] // SLAB          # static: TB // SLAB

    w1 = w1_ref[...]                                         # [S, H], VMEM-resident
    # Hoist the sublane broadcasts of the [1, H] row vectors out of the loop
    # (JAX does not CSE broadcast_in_dim).
    b1b = jnp.broadcast_to(b1_ref[...], (SLAB, H))           # [SLAB, H]
    w2b = jnp.broadcast_to(w2_ref[...], (SLAB, H))           # [SLAB, H]
    b2 = b2_ref[0, 0]                                        # f32 scalar from SMEM

    def slab_body(j, carry):
        off = pl.multiple_of(j * SLAB, SLAB)
        xs = x_ref[pl.ds(off, SLAB), :]                      # [SLAB, S]
        # fc1 on the MXU, exact f32 (K = state_dim is tiny; MXU has slack).
        h = jnp.dot(xs, w1,
                    preferred_element_type=jnp.float32,
                    precision=jax.lax.Precision.HIGHEST)     # [SLAB, H]
        h = jnp.maximum(h + b1b, 0.0)                        # bias + ReLU (VPU)
        # fc2 (output dim == 1): weighted lane reduction (VPU + XLU) instead of
        # an N=1 MXU pass; everything above stays in registers for this slab.
        v = jnp.sum(h * w2b, axis=1, keepdims=True)          # [SLAB, 1]
        o_ref[pl.ds(off, SLAB), :] = v + b2
        return carry

    jax.lax.fori_loop(0, n_slab, slab_body, 0, unroll=min(8, n_slab))


@functools.partial(jax.jit, static_argnames=("tb",))
def value_net_forward(x, w1, b1, w2, b2, *, tb=8192):
    """Forward pass of ValueNet.

    x : [B, state_dim] f32
    w1: [state_dim, 64] (fc1.weight.T), b1: [1, 64]
    w2: [64, 1]         (fc2.weight.T), b2: [1, 1]
    Returns [B, 1] f32 == fc2(relu(fc1(x))), exact f32 semantics.
    """
    B, S = x.shape
    H = w1.shape[1]

    # ---- static tiling decisions (shapes are static under jit) ----
    b_ru = pl.cdiv(B, SLAB) * SLAB
    tb_eff = max(SLAB, min(tb, b_ru))
    tb_eff = (tb_eff // SLAB) * SLAB
    # v7x megacore: keep >=2 parallel grid steps when there is enough work.
    if pl.cdiv(B, tb_eff) < 2 and b_ru >= 2 * SLAB:
        tb_eff = max(SLAB, pl.cdiv(b_ru // 2, SLAB) * SLAB)
    # VMEM budget: the (TB, S) x block and (TB, 1) out block are lane-padded to
    # (8,128) tiles -> ~512 B per batch row each, double-buffered (~2 KiB/row).
    # Cap TB at 16K so the footprint stays ~<=40 MiB (headroom under v7x's
    # 64 MiB physical VMEM; trivially fine on v5e/v6e).
    tb_eff = min(tb_eff, 16384)
    grid = (pl.cdiv(B, tb_eff),)
    vmem_limit = max(32 * 1024 * 1024, 4 * tb_eff * 512 + (8 << 20))

    # Tiny parameter layout fixes only (<= H*S elements).  x itself is consumed
    # in its natural [B, S] f32 layout: no transpose / cast / pad HBM pass.
    w1c = jnp.asarray(w1, jnp.float32).reshape(S, H)
    b1c = jnp.asarray(b1, jnp.float32).reshape(1, H)
    w2c = jnp.asarray(w2, jnp.float32).reshape(1, H)      # fc2 weight as a row
    b2c = jnp.asarray(b2, jnp.float32).reshape(1, 1)      # scalar -> SMEM

    return pl.pallas_call(
        value_net_kernel,
        out_shape=jax.ShapeDtypeStruct((B, 1), jnp.float32),
        grid_spec=pltpu.PrefetchScalarGridSpec(
            num_scalar_prefetch=0,
            grid=grid,
            in_specs=[
                pl.BlockSpec((tb_eff, S), lambda i: (i, 0)),        # x tile (pipelined)
                pl.BlockSpec((S, H), lambda i: (0, 0)),             # w1 (VMEM-resident)
                pl.BlockSpec((1, H), lambda i: (0, 0)),             # b1 (VMEM-resident)
                pl.BlockSpec((1, H), lambda i: (0, 0)),             # w2 row (resident)
                pl.BlockSpec(memory_space=pltpu.MemorySpace.SMEM),  # b2 scalar
            ],
            out_specs=pl.BlockSpec((tb_eff, 1), lambda i: (i, 0)),
        ),
        compiler_params=pltpu.CompilerParams(
            dimension_semantics=("parallel",),   # shard batch tiles across v7x's 2 TCs
            vmem_limit_bytes=vmem_limit,
        ),
    )(x, w1c, b1c, w2c, b2c)


def init_params(key, state_dim, hidden=HIDDEN):
    # PyTorch-Linear-style uniform init: U(-1/sqrt(fan_in), +1/sqrt(fan_in)).
    k1, k2, k3, k4 = jax.random.split(key, 4)
    bound1 = 1.0 / jnp.sqrt(jnp.float32(state_dim))
    bound2 = 1.0 / jnp.sqrt(jnp.float32(hidden))
    w1 = jax.random.uniform(k1, (state_dim, hidden), jnp.float32, -bound1, bound1)
    b1 = jax.random.uniform(k2, (1, hidden), jnp.float32, -bound1, bound1)
    w2 = jax.random.uniform(k3, (hidden, 1), jnp.float32, -bound2, bound2)
    b2 = jax.random.uniform(k4, (1, 1), jnp.float32, -bound2, bound2)
    return w1, b1, w2, b2


def _reference(x, w1, b1, w2, b2):
    h = jnp.maximum(jnp.dot(x, w1, precision="highest") + b1, 0.0)
    return jnp.dot(h, w2, precision="highest") + b2


if __name__ == "__main__":
    key = jax.random.PRNGKey(0)
    kx, kp, kx2 = jax.random.split(key, 3)

    state_dim = 4                       # CartPole-style state
    w1, b1, w2, b2 = init_params(kp, state_dim)

    # Small demo batch (single grid step, ragged block).
    batch = 8
    x = jax.random.normal(kx, (batch, state_dim), jnp.float32)
    out = jax.block_until_ready(value_net_forward(x, w1, b1, w2, b2))
    ref = _reference(x, w1, b1, w2, b2)
    assert out.shape == (batch, 1)
    assert jnp.allclose(out, ref, atol=1e-5, rtol=1e-5)

    # Larger ragged batch: exercises >=2 grid steps and the ragged last block.
    batch2 = 1000
    x2 = jax.random.normal(kx2, (batch2, state_dim), jnp.float32)
    out2 = jax.block_until_ready(value_net_forward(x2, w1, b1, w2, b2))
    ref2 = _reference(x2, w1, b1, w2, b2)
    assert out2.shape == (batch2, 1)
    assert jnp.allclose(out2, ref2, atol=1e-5, rtol=1e-5)

    print("KERNEL_OK")
</pallas_src>

<mosaic_0001>
module attributes {stable_mosaic.version = 11 : i64} {
  func.func @value_net_kernel(%arg0: i32, %arg1: memref<128x4xf32, #tpu.memory_space<vmem>>, %arg2: memref<4x64xf32, #tpu.memory_space<vmem>>, %arg3: memref<1x64xf32, #tpu.memory_space<vmem>>, %arg4: memref<1x64xf32, #tpu.memory_space<vmem>>, %arg5: memref<1x1xf32, #tpu.memory_space<smem>>, %arg6: memref<128x1xf32, #tpu.memory_space<vmem>>) attributes {dimension_semantics = [#tpu.dimension_semantics<parallel>], iteration_bounds = array<i64: 1>, scalar_prefetch = 0 : i64, scratch_operands = 0 : i64, tpu.core_type = #tpu.core_type<tc>, window_params = [{transform_indices = @transform_0, window_bounds = array<i64: 128, 4>}, {pipeline_mode = #tpu.pipeline_mode<synchronous>, transform_indices = @transform_1, window_bounds = array<i64: 4, 64>}, {pipeline_mode = #tpu.pipeline_mode<synchronous>, transform_indices = @transform_2, window_bounds = array<i64: 1, 64>}, {pipeline_mode = #tpu.pipeline_mode<synchronous>, transform_indices = @transform_3, window_bounds = array<i64: 1, 64>}, {transform_indices = @transform_4, window_bounds = array<i64: 1, 1>}, {transform_indices = @transform_5, window_bounds = array<i64: 128, 1>}]} {
    %c0 = arith.constant 0 : index
    %c0_0 = arith.constant 0 : index
    %0 = vector.load %arg2[%c0, %c0_0] : memref<4x64xf32, #tpu.memory_space<vmem>>, vector<4x64xf32>
    %c0_1 = arith.constant 0 : index
    %c0_2 = arith.constant 0 : index
    %1 = vector.load %arg3[%c0_1, %c0_2] : memref<1x64xf32, #tpu.memory_space<vmem>>, vector<1x64xf32>
    %2 = vector.shape_cast %1 : vector<1x64xf32> to vector<1x64xf32>
    %3 = vector.broadcast %2 : vector<1x64xf32> to vector<128x64xf32>
    %c0_3 = arith.constant 0 : index
    %c0_4 = arith.constant 0 : index
    %4 = vector.load %arg4[%c0_3, %c0_4] : memref<1x64xf32, #tpu.memory_space<vmem>>, vector<1x64xf32>
    %5 = vector.shape_cast %4 : vector<1x64xf32> to vector<1x64xf32>
    %6 = vector.broadcast %5 : vector<1x64xf32> to vector<128x64xf32>
    %c0_5 = arith.constant 0 : index
    %c0_6 = arith.constant 0 : index
    %7 = memref.load %arg5[%c0_5, %c0_6] : memref<1x1xf32, #tpu.memory_space<smem>>
    %c0_i32 = arith.constant 0 : i32
    %c128_i32 = arith.constant 128 : i32
    %8 = arith.muli %c0_i32, %c128_i32 : i32
    %9 = tpu.assume_multiple %8, 128 : i32
    %10 = arith.index_cast %9 : i32 to index
    %c0_7 = arith.constant 0 : index
    %11 = vector.load %arg1[%10, %c0_7] : memref<128x4xf32, #tpu.memory_space<vmem>>, vector<128x4xf32>
    %cst = arith.constant dense<0.000000e+00> : vector<128x64xf32>
    %12 = tpu.matmul %11, %0, %cst {dimension_numbers = #tpu.dot_dimension_numbers<[1], [0], [0], [1], [0, 0, 1, 1], [], []>, precision = #tpu.contract_precision<fp32>} : vector<128x4xf32>, vector<4x64xf32>, vector<128x64xf32> -> vector<128x64xf32>
    %13 = arith.addf %12, %3 : vector<128x64xf32>
    %cst_8 = arith.constant 0.000000e+00 : f32
    %14 = vector.broadcast %cst_8 : f32 to vector<128x64xf32>
    %15 = arith.maximumf %13, %14 : vector<128x64xf32>
    %16 = arith.mulf %15, %6 : vector<128x64xf32>
    %cst_9 = arith.constant dense<0.000000e+00> : vector<128xf32>
    %17 = vector.multi_reduction <add>, %16, %cst_9 [1] : vector<128x64xf32> to vector<128xf32>
    %18 = vector.shape_cast %17 : vector<128xf32> to vector<128x1xf32>
    %19 = vector.broadcast %7 : f32 to vector<128x1xf32>
    %20 = arith.addf %18, %19 : vector<128x1xf32>
    %21 = arith.index_cast %9 : i32 to index
    %c0_10 = arith.constant 0 : index
    %22 = vector.load %arg6[%21, %c0_10] : memref<128x1xf32, #tpu.memory_space<vmem>>, vector<128x1xf32>
    tpu.vector_store %arg6[%21, %c0_10], %20 {strides = array<i32>} : memref<128x1xf32, #tpu.memory_space<vmem>>, vector<128x1xf32>,
    %c1_i32 = arith.constant 1 : i32
    return
  }
  func.func @transform_0(%arg0: i32) -> (i32, i32) {
    %c0_i32 = arith.constant 0 : i32
    %c0_i32_0 = arith.constant 0 : i32
    return %arg0, %c0_i32 : i32, i32
  }
  func.func @transform_1(%arg0: i32) -> (i32, i32) {
    %c0_i32 = arith.constant 0 : i32
    %c0_i32_0 = arith.constant 0 : i32
    %c0_i32_1 = arith.constant 0 : i32
    return %c0_i32, %c0_i32_0 : i32, i32
  }
  func.func @transform_2(%arg0: i32) -> (i32, i32) {
    %c0_i32 = arith.constant 0 : i32
    %c0_i32_0 = arith.constant 0 : i32
    %c0_i32_1 = arith.constant 0 : i32
    return %c0_i32, %c0_i32_0 : i32, i32
  }
  func.func @transform_3(%arg0: i32) -> (i32, i32) {
    %c0_i32 = arith.constant 0 : i32
    %c0_i32_0 = arith.constant 0 : i32
    %c0_i32_1 = arith.constant 0 : i32
    return %c0_i32, %c0_i32_0 : i32, i32
  }
  func.func @transform_4(%arg0: i32) -> (i32, i32) {
    %c0_i32 = arith.constant 0 : i32
    %c0_i32_0 = arith.constant 0 : i32
    %c0_i32_1 = arith.constant 0 : i32
    return %c0_i32, %c0_i32_0 : i32, i32
  }
  func.func @transform_5(%arg0: i32) -> (i32, i32) {
    %c0_i32 = arith.constant 0 : i32
    %c0_i32_0 = arith.constant 0 : i32
    return %arg0, %c0_i32 : i32, i32
  }
}

</mosaic_0001>

<llo_original>
// kernel: value_net_forward.1
$region0: #{value_net_forward.1}
  #allocation0 [shape = 'u32[]', space=smem, size = 0x4, offset = 0x4, fixed_abs, tag = 'smem constant byte address 0x4 - core index']
  #allocation1 [shape = 'u32[144,128]{1,0:T(1,128)}', space=vmem, size = 0x12000, scoped, tag = 'internal scratch']
  #allocation2 [shape = 'f32[1,1]{1,0:T(1,128)S(6)}', space=smem, size = 0x200, scoped, tag = 'scoped memory for value_net_forward.1']
  %s0 = inlined_call_operand.vmem [shape: f32[8,4], index: 0, kind: input, shape index: {}]
  %s1 = inlined_call_operand.vmem [shape: f32[4,64], index: 1, kind: input, shape index: {}]
  %s2 = inlined_call_operand.vmem [shape: f32[1,64], index: 2, kind: input, shape index: {}]
  %s3 = inlined_call_operand.vmem [shape: f32[1,64], index: 3, kind: input, shape index: {}]
  %s4 = inlined_call_operand.<no memory space> [shape: f32[1,1], index: 4, kind: input, shape index: {}]
  %s5 = inlined_call_operand.vmem [shape: f32[8,1], index: 5, kind: output, shape index: {}]
  %s6 = sld [smem:[#allocation0]]
  $region64: #{value_net_forward.1} parent=0
    _
  %s8 = ssub.s32 1, %s6
  %s9 = scalar_select 0, %s8, %s6
  %10 = sst [smem:[#allocation2]] %s4
  $region1: #{value_net_forward.1} parent=0
    #allocation3 [shape = 'u8[65536]{0}', space=vmem, size = 0x10000, scoped, tag = 'output window, operand 0, single buffered']
    // Predicated region
    $region2: #{value_net_forward.1} parent=1 // pred_check
      _
    $region3: #{value_net_forward.1} parent=1 // pred_check_branch
      %12 = sbr.rel (0) target = $region5
    $region4: #{value_net_forward.1} parent=1 // pred_region
      _
    $region5: #{value_net_forward.1} parent=1 // pred_fallthru
      _
    // Predicated region
    $region6: #{value_net_forward.1} parent=1 // pred_check
      _
    $region7: #{value_net_forward.1} parent=1 // pred_check_branch
      %14 = sbr.rel (0) target = $region9
    $region8: #{value_net_forward.1} parent=1 // pred_region
      _
    $region9: #{value_net_forward.1} parent=1 // pred_fallthru
      _
    // Predicated region
    $region10: #{value_net_forward.1} parent=1 // pred_check
      _
    $region11: #{value_net_forward.1} parent=1 // pred_check_branch
      %16 = sbr.rel (0) target = $region13
    $region12: #{value_net_forward.1} parent=1 // pred_region
      _
    $region13: #{value_net_forward.1} parent=1 // pred_fallthru
      _
    // Predicated region
    $region14: #{value_net_forward.1} parent=1 // pred_check
      _
    $region15: #{value_net_forward.1} parent=1 // pred_check_branch
      %18 = sbr.rel (0) target = $region17
    $region16: #{value_net_forward.1} parent=1 // pred_region
      _
    $region17: #{value_net_forward.1} parent=1 // pred_fallthru
      _
    // Predicated region
    $region18: #{value_net_forward.1} parent=1 // pred_check
      _
    $region19: #{value_net_forward.1} parent=1 // pred_check_branch
      %20 = sbr.rel (0) target = $region21
    $region20: #{value_net_forward.1} parent=1 // pred_region
      _
    $region21: #{value_net_forward.1} parent=1 // pred_fallthru
      _
    %v21 = vld [vmem:[%s1] sm:$0xf]
    %v22 = vld [vmem:[%s2] sm:$0x1]
    %v24 = vlaneseq
    %v25 = vshrl.u32 %v24, 7
    %v26 = vsub.s32 0, %v25
    %v27 = vrot.slane %v22, %v26
    %v29 = vld [vmem:[%s3] sm:$0x1]
    %v31 = vlaneseq
    %v32 = vshrl.u32 %v31, 7
    %v33 = vsub.s32 0, %v32
    %v34 = vrot.slane %v29, %v33
    %s36 = sld [smem:[#allocation2]]
    %v37 = vld [vmem:[%s0] sm:$0xff]
    %v38 = vld [vmem:[%s0 + $0x8] sm:$0xff]
    %v39 = vld [vmem:[%s0 + $0x10] sm:$0xff]
    %v40 = vld [vmem:[%s0 + $0x18] sm:$0xff]
    %v41 = vld [vmem:[%s0 + $0x20] sm:$0xff]
    %v42 = vld [vmem:[%s0 + $0x28] sm:$0xff]
    %v43 = vld [vmem:[%s0 + $0x30] sm:$0xff]
    %v44 = vld [vmem:[%s0 + $0x38] sm:$0xff]
    %v45 = vld [vmem:[%s0 + $0x40] sm:$0xff]
    %v46 = vld [vmem:[%s0 + $0x48] sm:$0xff]
    %v47 = vld [vmem:[%s0 + $0x50] sm:$0xff]
    %v48 = vld [vmem:[%s0 + $0x58] sm:$0xff]
    %v49 = vld [vmem:[%s0 + $0x60] sm:$0xff]
    %v50 = vld [vmem:[%s0 + $0x68] sm:$0xff]
    %v51 = vld [vmem:[%s0 + $0x70] sm:$0xff]
    %v52 = vld [vmem:[%s0 + $0x78] sm:$0xff]
    %vm53 = vcmask 31744
    %v55 = vsel %vm53, %v37, 0
    %v58 = vsel %vm53, %v38, 0
    %v61 = vsel %vm53, %v39, 0
    %v64 = vsel %vm53, %v40, 0
    %v67 = vsel %vm53, %v41, 0
    %v70 = vsel %vm53, %v42, 0
    %v73 = vsel %vm53, %v43, 0
    %v76 = vsel %vm53, %v44, 0
    %v79 = vsel %vm53, %v45, 0
    %v82 = vsel %vm53, %v46, 0
    %v85 = vsel %vm53, %v47, 0
    %v88 = vsel %vm53, %v48, 0
    %v91 = vsel %vm53, %v49, 0
    %v94 = vsel %vm53, %v50, 0
    %v97 = vsel %vm53, %v51, 0
    %v100 = vsel %vm53, %v52, 0
    %vm102 = vcmask 1043456
    %v104 = vsel %vm102, %v21, 0
    %106 = vmatprep.subr.mxu0 0.0
    %v107 = vand.u32 %v104, 4294901760
    %108 = vmatpush1.msra.mxu0 %v107
    %109 = vmatprep.subr.mxu0 0.0
    %110 = vmatpush1.msra.mxu0 0.0
    %111 = vmatprep.subr.mxu0 0.0
    %112 = vmatpush1.msra.mxu0 0.0
    %113 = vmatprep.subr.mxu0 0.0
    %114 = vmatpush1.msra.mxu0 0.0
    %115 = vmatprep.subr.mxu0 0.0
    %116 = vmatpush1.msra.mxu0 0.0
    %117 = vmatprep.subr.mxu0 0.0
    %118 = vmatpush1.msra.mxu0 0.0
    %119 = vmatprep.subr.mxu0 0.0
    %120 = vmatpush1.msra.mxu0 0.0
    %121 = vmatprep.subr.mxu0 0.0
    %122 = vmatpush1.msra.mxu0 0.0
    %123 = vmatprep.subr.mxu0 0.0
    %124 = vmatpush1.msra.mxu0 0.0
    %125 = vmatprep.subr.mxu0 0.0
    %126 = vmatpush1.msra.mxu0 0.0
    %127 = vmatprep.subr.mxu0 0.0
    %128 = vmatpush1.msra.mxu0 0.0
    %129 = vmatprep.subr.mxu0 0.0
    %130 = vmatpush1.msra.mxu0 0.0
    %131 = vmatprep.subr.mxu0 0.0
    %132 = vmatpush1.msra.mxu0 0.0
    %133 = vmatprep.subr.mxu0 0.0
    %134 = vmatpush1.msra.mxu0 0.0
    %135 = vmatprep.subr.mxu0 0.0
    %136 = vmatpush1.msra.mxu0 0.0
    %137 = vmatprep.subr.mxu0 0.0
    %138 = vmatpush1.msra.mxu0 0.0
    %139 = vmatprep.subr.mxu0 0.0
    %140 = vmatpush1.msra.mxu0 0.0
    %141 = vmatprep.subr.mxu0 0.0
    %142 = vmatpush1.msra.mxu0 0.0
    %143 = vmatprep.subr.mxu0 0.0
    %144 = vmatpush1.msra.mxu0 0.0
    %145 = vmatprep.subr.mxu0 0.0
    %146 = vmatpush1.msra.mxu0 0.0
    %147 = vmatprep.subr.mxu0 0.0
    %148 = vmatpush1.msra.mxu0 0.0
    %149 = vmatprep.subr.mxu0 0.0
    %150 = vmatpush1.msra.mxu0 0.0
    %151 = vmatprep.subr.mxu0 0.0
    %152 = vmatpush1.msra.mxu0 0.0
    %153 = vmatprep.subr.mxu0 0.0
    %154 = vmatpush1.msra.mxu0 0.0
    %155 = vmatprep.subr.mxu0 0.0
    %156 = vmatpush1.msra.mxu0 0.0
    %157 = vmatprep.subr.mxu0 0.0
    %158 = vmatpush1.msra.mxu0 0.0
    %159 = vmatprep.subr.mxu0 0.0
    %160 = vmatpush1.msra.mxu0 0.0
    %161 = vmatprep.subr.mxu0 0.0
    %162 = vmatpush1.msra.mxu0 0.0
    %163 = vmatprep.subr.mxu0 0.0
    %164 = vmatpush1.msra.mxu0 0.0
    %165 = vmatprep.subr.mxu0 0.0
    %166 = vmatpush1.msra.mxu0 0.0
    %167 = vmatprep.subr.mxu0 0.0
    %168 = vmatpush1.msra.mxu0 0.0
    %169 = vmatprep.subr.mxu0 0.0
    %170 = vmatpush1.msra.mxu0 0.0
    %171 = vmatprep.mubr.f32.mxu0 0.0
    %v172 = vand.u32 %v55, 4294901760
    %v173 = vsub.f32 %v55, %v172
    %v174 = vand.u32 %v173, 4294901760
    %v175 = vsub.f32 %v173, %v174
    %v176 = vand.u32 %v175, 4294901760
    %177 = vmatmul.mubr.f32.gmra.mrb[0].mxu0 %v176
    %v178 = vpop.f32.mrb[0].mxu0
    %v179 = vadd.f32 %v27, %v178
    %v180 = vpop.f32.mrb[0].mxu0
    %181 = vmatprep.mubr.f32.mxu0 0.0
    %v182 = vand.u32 %v58, 4294901760
    %v183 = vsub.f32 %v58, %v182
    %v184 = vand.u32 %v183, 4294901760
    %v185 = vsub.f32 %v183, %v184
    %v186 = vand.u32 %v185, 4294901760
    %187 = vmatmul.mubr.f32.gmra.mrb[0].mxu0 %v186
    %v188 = vpop.f32.mrb[0].mxu0
    %v189 = vadd.f32 %v27, %v188
    %v190 = vpop.f32.mrb[0].mxu0
    %191 = vmatprep.mubr.f32.mxu0 0.0
    %v192 = vand.u32 %v61, 4294901760
    %v193 = vsub.f32 %v61, %v192
    %v194 = vand.u32 %v193, 4294901760
    %v195 = vsub.f32 %v193, %v194
    %v196 = vand.u32 %v195, 4294901760
    %197 = vmatmul.mubr.f32.gmra.mrb[0].mxu0 %v196
    %v198 = vpop.f32.mrb[0].mxu0
    %v199 = vadd.f32 %v27, %v198
    %v200 = vpop.f32.mrb[0].mxu0
    %201 = vmatprep.mubr.f32.mxu0 0.0
    %v202 = vand.u32 %v64, 4294901760
    %v203 = vsub.f32 %v64, %v202
    %v204 = vand.u32 %v203, 4294901760
    %v205 = vsub.f32 %v203, %v204
    %v206 = vand.u32 %v205, 4294901760
    %207 = vmatmul.mubr.f32.gmra.mrb[0].mxu0 %v206
    %v208 = vpop.f32.mrb[0].mxu0
    %v209 = vadd.f32 %v27, %v208
    %v210 = vpop.f32.mrb[0].mxu0
    %211 = vmatprep.mubr.f32.mxu0 0.0
    %v212 = vand.u32 %v67, 4294901760
    %v213 = vsub.f32 %v67, %v212
    %v214 = vand.u32 %v213, 4294901760
    %v215 = vsub.f32 %v213, %v214
    %v216 = vand.u32 %v215, 4294901760
    %217 = vmatmul.mubr.f32.gmra.mrb[0].mxu0 %v216
    %v218 = vpop.f32.mrb[0].mxu0
    %v219 = vadd.f32 %v27, %v218
    %v220 = vpop.f32.mrb[0].mxu0
    %221 = vmatprep.mubr.f32.mxu0 0.0
    %v222 = vand.u32 %v70, 4294901760
    %v223 = vsub.f32 %v70, %v222
    %v224 = vand.u32 %v223, 4294901760
    %v225 = vsub.f32 %v223, %v224
    %v226 = vand.u32 %v225, 4294901760
    %227 = vmatmul.mubr.f32.gmra.mrb[0].mxu0 %v226
    %v228 = vpop.f32.mrb[0].mxu0
    %v229 = vadd.f32 %v27, %v228
    %v230 = vpop.f32.mrb[0].mxu0
    %231 = vmatprep.mubr.f32.mxu0 0.0
    %v232 = vand.u32 %v73, 4294901760
    %v233 = vsub.f32 %v73, %v232
    %v234 = vand.u32 %v233, 4294901760
    %v235 = vsub.f32 %v233, %v234
    %v236 = vand.u32 %v235, 4294901760
    %237 = vmatmul.mubr.f32.gmra.mrb[0].mxu0 %v236
    %v238 = vpop.f32.mrb[0].mxu0
    %v239 = vadd.f32 %v27, %v238
    %v240 = vpop.f32.mrb[0].mxu0
    %241 = vmatprep.mubr.f32.mxu0 0.0
    %v242 = vand.u32 %v76, 4294901760
    %v243 = vsub.f32 %v76, %v242
    %v244 = vand.u32 %v243, 4294901760
    %v245 = vsub.f32 %v243, %v244
    %v246 = vand.u32 %v245, 4294901760
    %247 = vmatmul.mubr.f32.gmra.mrb[0].mxu0 %v246
    %v248 = vpop.f32.mrb[0].mxu0
    %v249 = vadd.f32 %v27, %v248
    %v250 = vpop.f32.mrb[0].mxu0
    %251 = vmatprep.mubr.f32.mxu0 0.0
    %v252 = vand.u32 %v79, 4294901760
    %v253 = vsub.f32 %v79, %v252
    %v254 = vand.u32 %v253, 4294901760
    %v255 = vsub.f32 %v253, %v254
    %v256 = vand.u32 %v255, 4294901760
    %257 = vmatmul.mubr.f32.gmra.mrb[0].mxu0 %v256
    %v258 = vpop.f32.mrb[0].mxu0
    %v259 = vadd.f32 %v27, %v258
    %v260 = vpop.f32.mrb[0].mxu0
    %261 = vmatprep.mubr.f32.mxu0 0.0
    %v262 = vand.u32 %v82, 4294901760
    %v263 = vsub.f32 %v82, %v262
    %v264 = vand.u32 %v263, 4294901760
    %v265 = vsub.f32 %v263, %v264
    %v266 = vand.u32 %v265, 4294901760
    %267 = vmatmul.mubr.f32.gmra.mrb[0].mxu0 %v266
    %v268 = vpop.f32.mrb[0].mxu0
    %v269 = vadd.f32 %v27, %v268
    %v270 = vpop.f32.mrb[0].mxu0
    %271 = vmatprep.mubr.f32.mxu0 0.0
    %v272 = vand.u32 %v85, 4294901760
    %v273 = vsub.f32 %v85, %v272
    %v274 = vand.u32 %v273, 4294901760
    %v275 = vsub.f32 %v273, %v274
    %v276 = vand.u32 %v275, 4294901760
    %277 = vmatmul.mubr.f32.gmra.mrb[0].mxu0 %v276
    %v278 = vpop.f32.mrb[0].mxu0
    %v279 = vadd.f32 %v27, %v278
    %v280 = vpop.f32.mrb[0].mxu0
    %281 = vmatprep.mubr.f32.mxu0 0.0
    %v282 = vand.u32 %v88, 4294901760
    %v283 = vsub.f32 %v88, %v282
    %v284 = vand.u32 %v283, 4294901760
    %v285 = vsub.f32 %v283, %v284
    %v286 = vand.u32 %v285, 4294901760
    %287 = vmatmul.mubr.f32.gmra.mrb[0].mxu0 %v286
    %v288 = vpop.f32.mrb[0].mxu0
    %v289 = vadd.f32 %v27, %v288
    %v290 = vpop.f32.mrb[0].mxu0
    %291 = vmatprep.mubr.f32.mxu0 0.0
    %v292 = vand.u32 %v91, 4294901760
    %v293 = vsub.f32 %v91, %v292
    %v294 = vand.u32 %v293, 4294901760
    %v295 = vsub.f32 %v293, %v294
    %v296 = vand.u32 %v295, 4294901760
    %297 = vmatmul.mubr.f32.gmra.mrb[0].mxu0 %v296
    %v298 = vpop.f32.mrb[0].mxu0
    %v299 = vadd.f32 %v27, %v298
    %v300 = vpop.f32.mrb[0].mxu0
    %301 = vmatprep.mubr.f32.mxu0 0.0
    %v302 = vand.u32 %v94, 4294901760
    %v303 = vsub.f32 %v94, %v302
    %v304 = vand.u32 %v303, 4294901760
    %v305 = vsub.f32 %v303, %v304
    %v306 = vand.u32 %v305, 4294901760
    %307 = vmatmul.mubr.f32.gmra.mrb[0].mxu0 %v306
    %v308 = vpop.f32.mrb[0].mxu0
    %v309 = vadd.f32 %v27, %v308
    %v310 = vpop.f32.mrb[0].mxu0
    %311 = vmatprep.mubr.f32.mxu0 0.0
    %v312 = vand.u32 %v97, 4294901760
    %v313 = vsub.f32 %v97, %v312
    %v314 = vand.u32 %v313, 4294901760
    %v315 = vsub.f32 %v313, %v314
    %v316 = vand.u32 %v315, 4294901760
    %317 = vmatmul.mubr.f32.gmra.mrb[0].mxu0 %v316
    %v318 = vpop.f32.mrb[0].mxu0
    %v319 = vadd.f32 %v27, %v318
    %v320 = vpop.f32.mrb[0].mxu0
    %321 = vmatprep.mubr.f32.mxu0 0.0
    %v322 = vand.u32 %v100, 4294901760
    %v323 = vsub.f32 %v100, %v322
    %v324 = vand.u32 %v323, 4294901760
    %v325 = vsub.f32 %v323, %v324
    %v326 = vand.u32 %v325, 4294901760
    %327 = vmatmul.mubr.f32.gmra.mrb[0].mxu0 %v326
    %v328 = vpop.f32.mrb[0].mxu0
    %v329 = vadd.f32 %v27, %v328
    %v330 = vpop.f32.mrb[0].mxu0
    %331 = vdwg.mxu0
    %332 = vmatprep.subr.mxu0 0.0
    %v333 = vand.u32 %v104, 4294901760
    %v334 = vsub.f32 %v104, %v333
    %v335 = vand.u32 %v334, 4294901760
    %v336 = vsub.f32 %v334, %v335
    %v337 = vand.u32 %v336, 4294901760
    %338 = vmatpush1.msra.mxu0 %v337
    %339 = vmatprep.subr.mxu0 0.0
    %340 = vmatpush1.msra.mxu0 0.0
    %341 = vmatprep.subr.mxu0 0.0
    %342 = vmatpush1.msra.mxu0 0.0
    %343 = vmatprep.subr.mxu0 0.0
    %344 = vmatpush1.msra.mxu0 0.0
    %345 = vmatprep.subr.mxu0 0.0
    %346 = vmatpush1.msra.mxu0 0.0
    %347 = vmatprep.subr.mxu0 0.0
    %348 = vmatpush1.msra.mxu0 0.0
    %349 = vmatprep.subr.mxu0 0.0
    %350 = vmatpush1.msra.mxu0 0.0
    %351 = vmatprep.subr.mxu0 0.0
    %352 = vmatpush1.msra.mxu0 0.0
    %353 = vmatprep.subr.mxu0 0.0
    %354 = vmatpush1.msra.mxu0 0.0
    %355 = vmatprep.subr.mxu0 0.0
    %356 = vmatpush1.msra.mxu0 0.0
    %357 = vmatprep.subr.mxu0 0.0
    %358 = vmatpush1.msra.mxu0 0.0
    %359 = vmatprep.subr.mxu0 0.0
    %360 = vmatpush1.msra.mxu0 0.0
    %361 = vmatprep.subr.mxu0 0.0
    %362 = vmatpush1.msra.mxu0 0.0
    %363 = vmatprep.subr.mxu0 0.0
    %364 = vmatpush1.msra.mxu0 0.0
    %365 = vmatprep.subr.mxu0 0.0
    %366 = vmatpush1.msra.mxu0 0.0
    %367 = vmatprep.subr.mxu0 0.0
    %368 = vmatpush1.msra.mxu0 0.0
    %369 = vmatprep.subr.mxu0 0.0
    %370 = vmatpush1.msra.mxu0 0.0
    %371 = vmatprep.subr.mxu0 0.0
    %372 = vmatpush1.msra.mxu0 0.0
    %373 = vmatprep.subr.mxu0 0.0
    %374 = vmatpush1.msra.mxu0 0.0
    %375 = vmatprep.subr.mxu0 0.0
    %376 = vmatpush1.msra.mxu0 0.0
    %377 = vmatprep.subr.mxu0 0.0
    %378 = vmatpush1.msra.mxu0 0.0
    %379 = vmatprep.subr.mxu0 0.0
    %380 = vmatpush1.msra.mxu0 0.0
    %381 = vmatprep.subr.mxu0 0.0
    %382 = vmatpush1.msra.mxu0 0.0
    %383 = vmatprep.subr.mxu0 0.0
    %384 = vmatpush1.msra.mxu0 0.0
    %385 = vmatprep.subr.mxu0 0.0
    %386 = vmatpush1.msra.mxu0 0.0
    %387 = vmatprep.subr.mxu0 0.0
    %388 = vmatpush1.msra.mxu0 0.0
    %389 = vmatprep.subr.mxu0 0.0
    %390 = vmatpush1.msra.mxu0 0.0
    %391 = vmatprep.subr.mxu0 0.0
    %392 = vmatpush1.msra.mxu0 0.0
    %393 = vmatprep.subr.mxu0 0.0
    %394 = vmatpush1.msra.mxu0 0.0
    %395 = vmatprep.subr.mxu0 0.0
    %396 = vmatpush1.msra.mxu0 0.0
    %397 = vmatprep.subr.mxu0 0.0
    %398 = vmatpush1.msra.mxu0 0.0
    %399 = vmatprep.subr.mxu0 0.0
    %400 = vmatpush1.msra.mxu0 0.0
    %401 = vmatprep.mubr.f32.mxu0 0.0
    %v402 = vand.u32 %v55, 4294901760
    %403 = vmatmul.mubr.f32.gmra.mrb[0].mxu0 %v402
    %v404 = vpop.f32.mrb[0].mxu0
    %v405 = vadd.f32 %v179, %v404
    %v406 = vpop.f32.mrb[0].mxu0
    %407 = vmatprep.mubr.f32.mxu0 0.0
    %v408 = vand.u32 %v58, 4294901760
    %409 = vmatmul.mubr.f32.gmra.mrb[0].mxu0 %v408
    %v410 = vpop.f32.mrb[0].mxu0
    %v411 = vadd.f32 %v189, %v410
    %v412 = vpop.f32.mrb[0].mxu0
    %413 = vmatprep.mubr.f32.mxu0 0.0
    %v414 = vand.u32 %v61, 4294901760
    %415 = vmatmul.mubr.f32.gmra.mrb[0].mxu0 %v414
    %v416 = vpop.f32.mrb[0].mxu0
    %v417 = vadd.f32 %v199, %v416
    %v418 = vpop.f32.mrb[0].mxu0
    %419 = vmatprep.mubr.f32.mxu0 0.0
    %v420 = vand.u32 %v64, 4294901760
    %421 = vmatmul.mubr.f32.gmra.mrb[0].mxu0 %v420
    %v422 = vpop.f32.mrb[0].mxu0
    %v423 = vadd.f32 %v209, %v422
    %v424 = vpop.f32.mrb[0].mxu0
    %425 = vmatprep.mubr.f32.mxu0 0.0
    %v426 = vand.u32 %v67, 4294901760
    %427 = vmatmul.mubr.f32.gmra.mrb[0].mxu0 %v426
    %v428 = vpop.f32.mrb[0].mxu0
    %v429 = vadd.f32 %v219, %v428
    %v430 = vpop.f32.mrb[0].mxu0
    %431 = vmatprep.mubr.f32.mxu0 0.0
    %v432 = vand.u32 %v70, 4294901760
    %433 = vmatmul.mubr.f32.gmra.mrb[0].mxu0 %v432
    %v434 = vpop.f32.mrb[0].mxu0
    %v435 = vadd.f32 %v229, %v434
    %v436 = vpop.f32.mrb[0].mxu0
    %437 = vmatprep.mubr.f32.mxu0 0.0
    %v438 = vand.u32 %v73, 4294901760
    %439 = vmatmul.mubr.f32.gmra.mrb[0].mxu0 %v438
    %v440 = vpop.f32.mrb[0].mxu0
    %v441 = vadd.f32 %v239, %v440
    %v442 = vpop.f32.mrb[0].mxu0
    %443 = vmatprep.mubr.f32.mxu0 0.0
    %v444 = vand.u32 %v76, 4294901760
    %445 = vmatmul.mubr.f32.gmra.mrb[0].mxu0 %v444
    %v446 = vpop.f32.mrb[0].mxu0
    %v447 = vadd.f32 %v249, %v446
    %v448 = vpop.f32.mrb[0].mxu0
    %449 = vmatprep.mubr.f32.mxu0 0.0
    %v450 = vand.u32 %v79, 4294901760
    %451 = vmatmul.mubr.f32.gmra.mrb[0].mxu0 %v450
    %v452 = vpop.f32.mrb[0].mxu0
    %v453 = vadd.f32 %v259, %v452
    %v454 = vpop.f32.mrb[0].mxu0
    %455 = vmatprep.mubr.f32.mxu0 0.0
    %v456 = vand.u32 %v82, 4294901760
    %457 = vmatmul.mubr.f32.gmra.mrb[0].mxu0 %v456
    %v458 = vpop.f32.mrb[0].mxu0
    %v459 = vadd.f32 %v269, %v458
    %v460 = vpop.f32.mrb[0].mxu0
    %461 = vmatprep.mubr.f32.mxu0 0.0
    %v462 = vand.u32 %v85, 4294901760
    %463 = vmatmul.mubr.f32.gmra.mrb[0].mxu0 %v462
    %v464 = vpop.f32.mrb[0].mxu0
    %v465 = vadd.f32 %v279, %v464
    %v466 = vpop.f32.mrb[0].mxu0
    %467 = vmatprep.mubr.f32.mxu0 0.0
    %v468 = vand.u32 %v88, 4294901760
    %469 = vmatmul.mubr.f32.gmra.mrb[0].mxu0 %v468
    %v470 = vpop.f32.mrb[0].mxu0
    %v471 = vadd.f32 %v289, %v470
    %v472 = vpop.f32.mrb[0].mxu0
    %473 = vmatprep.mubr.f32.mxu0 0.0
    %v474 = vand.u32 %v91, 4294901760
    %475 = vmatmul.mubr.f32.gmra.mrb[0].mxu0 %v474
    %v476 = vpop.f32.mrb[0].mxu0
    %v477 = vadd.f32 %v299, %v476
    %v478 = vpop.f32.mrb[0].mxu0
    %479 = vmatprep.mubr.f32.mxu0 0.0
    %v480 = vand.u32 %v94, 4294901760
    %481 = vmatmul.mubr.f32.gmra.mrb[0].mxu0 %v480
    %v482 = vpop.f32.mrb[0].mxu0
    %v483 = vadd.f32 %v309, %v482
    %v484 = vpop.f32.mrb[0].mxu0
    %485 = vmatprep.mubr.f32.mxu0 0.0
    %v486 = vand.u32 %v97, 4294901760
    %487 = vmatmul.mubr.f32.gmra.mrb[0].mxu0 %v486
    %v488 = vpop.f32.mrb[0].mxu0
    %v489 = vadd.f32 %v319, %v488
    %v490 = vpop.f32.mrb[0].mxu0
    %491 = vmatprep.mubr.f32.mxu0 0.0
    %v492 = vand.u32 %v100, 4294901760
    %493 = vmatmul.mubr.f32.gmra.mrb[0].mxu0 %v492
    %v494 = vpop.f32.mrb[0].mxu0
    %v495 = vadd.f32 %v329, %v494
    %v496 = vpop.f32.mrb[0].mxu0
    %497 = vdwg.mxu0
    %498 = vmatprep.subr.mxu0 0.0
    %v499 = vand.u32 %v104, 4294901760
    %v500 = vsub.f32 %v104, %v499
    %501 = vmatpush1.msra.mxu0 %v500
    %502 = vmatprep.subr.mxu0 0.0
    %503 = vmatpush1.msra.mxu0 0.0
    %504 = vmatprep.subr.mxu0 0.0
    %505 = vmatpush1.msra.mxu0 0.0
    %506 = vmatprep.subr.mxu0 0.0
    %507 = vmatpush1.msra.mxu0 0.0
    %508 = vmatprep.subr.mxu0 0.0
    %509 = vmatpush1.msra.mxu0 0.0
    %510 = vmatprep.subr.mxu0 0.0
    %511 = vmatpush1.msra.mxu0 0.0
    %512 = vmatprep.subr.mxu0 0.0
    %513 = vmatpush1.msra.mxu0 0.0
    %514 = vmatprep.subr.mxu0 0.0
    %515 = vmatpush1.msra.mxu0 0.0
    %516 = vmatprep.subr.mxu0 0.0
    %517 = vmatpush1.msra.mxu0 0.0
    %518 = vmatprep.subr.mxu0 0.0
    %519 = vmatpush1.msra.mxu0 0.0
    %520 = vmatprep.subr.mxu0 0.0
    %521 = vmatpush1.msra.mxu0 0.0
    %522 = vmatprep.subr.mxu0 0.0
    %523 = vmatpush1.msra.mxu0 0.0
    %524 = vmatprep.subr.mxu0 0.0
    %525 = vmatpush1.msra.mxu0 0.0
    %526 = vmatprep.subr.mxu0 0.0
    %527 = vmatpush1.msra.mxu0 0.0
    %528 = vmatprep.subr.mxu0 0.0
    %529 = vmatpush1.msra.mxu0 0.0
    %530 = vmatprep.subr.mxu0 0.0
    %531 = vmatpush1.msra.mxu0 0.0
    %532 = vmatprep.subr.mxu0 0.0
    %533 = vmatpush1.msra.mxu0 0.0
    %534 = vmatprep.subr.mxu0 0.0
    %535 = vmatpush1.msra.mxu0 0.0
    %536 = vmatprep.subr.mxu0 0.0
    %537 = vmatpush1.msra.mxu0 0.0
    %538 = vmatprep.subr.mxu0 0.0
    %539 = vmatpush1.msra.mxu0 0.0
    %540 = vmatprep.subr.mxu0 0.0
    %541 = vmatpush1.msra.mxu0 0.0
    %542 = vmatprep.subr.mxu0 0.0
    %543 = vmatpush1.msra.mxu0 0.0
    %544 = vmatprep.subr.mxu0 0.0
    %545 = vmatpush1.msra.mxu0 0.0
    %546 = vmatprep.subr.mxu0 0.0
    %547 = vmatpush1.msra.mxu0 0.0
    %548 = vmatprep.subr.mxu0 0.0
    %549 = vmatpush1.msra.mxu0 0.0
    %550 = vmatprep.subr.mxu0 0.0
    %551 = vmatpush1.msra.mxu0 0.0
    %552 = vmatprep.subr.mxu0 0.0
    %553 = vmatpush1.msra.mxu0 0.0
    %554 = vmatprep.subr.mxu0 0.0
    %555 = vmatpush1.msra.mxu0 0.0
    %556 = vmatprep.subr.mxu0 0.0
    %557 = vmatpush1.msra.mxu0 0.0
    %558 = vmatprep.subr.mxu0 0.0
    %559 = vmatpush1.msra.mxu0 0.0
    %560 = vmatprep.subr.mxu0 0.0
    %561 = vmatpush1.msra.mxu0 0.0
    %562 = vmatprep.subr.mxu0 0.0
    %563 = vmatpush1.msra.mxu0 0.0
    %564 = vmatprep.mubr.f32.mxu0 0.0
    %v565 = vand.u32 %v55, 4294901760
    %v566 = vsub.f32 %v55, %v565
    %567 = vmatmul.mubr.f32.gmra.mrb[0].mxu0 %v566
    %v568 = vpop.f32.mrb[0].mxu0
    %v569 = vadd.f32 %v405, %v568
    %v570 = vpop.f32.mrb[0].mxu0
    %571 = vmatprep.mubr.f32.mxu0 0.0
    %v572 = vand.u32 %v58, 4294901760
    %v573 = vsub.f32 %v58, %v572
    %574 = vmatmul.mubr.f32.gmra.mrb[0].mxu0 %v573
    %v575 = vpop.f32.mrb[0].mxu0
    %v576 = vadd.f32 %v411, %v575
    %v577 = vpop.f32.mrb[0].mxu0
    %578 = vmatprep.mubr.f32.mxu0 0.0
    %v579 = vand.u32 %v61, 4294901760
    %v580 = vsub.f32 %v61, %v579
    %581 = vmatmul.mubr.f32.gmra.mrb[0].mxu0 %v580
    %v582 = vpop.f32.mrb[0].mxu0
    %v583 = vadd.f32 %v417, %v582
    %v584 = vpop.f32.mrb[0].mxu0
    %585 = vmatprep.mubr.f32.mxu0 0.0
    %v586 = vand.u32 %v64, 4294901760
    %v587 = vsub.f32 %v64, %v586
    %588 = vmatmul.mubr.f32.gmra.mrb[0].mxu0 %v587
    %v589 = vpop.f32.mrb[0].mxu0
    %v590 = vadd.f32 %v423, %v589
    %v591 = vpop.f32.mrb[0].mxu0
    %592 = vmatprep.mubr.f32.mxu0 0.0
    %v593 = vand.u32 %v67, 4294901760
    %v594 = vsub.f32 %v67, %v593
    %595 = vmatmul.mubr.f32.gmra.mrb[0].mxu0 %v594
    %v596 = vpop.f32.mrb[0].mxu0
    %v597 = vadd.f32 %v429, %v596
    %v598 = vpop.f32.mrb[0].mxu0
    %599 = vmatprep.mubr.f32.mxu0 0.0
    %v600 = vand.u32 %v70, 4294901760
    %v601 = vsub.f32 %v70, %v600
    %602 = vmatmul.mubr.f32.gmra.mrb[0].mxu0 %v601
    %v603 = vpop.f32.mrb[0].mxu0
    %v604 = vadd.f32 %v435, %v603
    %v605 = vpop.f32.mrb[0].mxu0
    %606 = vmatprep.mubr.f32.mxu0 0.0
    %v607 = vand.u32 %v73, 4294901760
    %v608 = vsub.f32 %v73, %v607
    %609 = vmatmul.mubr.f32.gmra.mrb[0].mxu0 %v608
    %v610 = vpop.f32.mrb[0].mxu0
    %v611 = vadd.f32 %v441, %v610
    %v612 = vpop.f32.mrb[0].mxu0
    %613 = vmatprep.mubr.f32.mxu0 0.0
    %v614 = vand.u32 %v76, 4294901760
    %v615 = vsub.f32 %v76, %v614
    %616 = vmatmul.mubr.f32.gmra.mrb[0].mxu0 %v615
    %v617 = vpop.f32.mrb[0].mxu0
    %v618 = vadd.f32 %v447, %v617
    %v619 = vpop.f32.mrb[0].mxu0
    %620 = vmatprep.mubr.f32.mxu0 0.0
    %v621 = vand.u32 %v79, 4294901760
    %v622 = vsub.f32 %v79, %v621
    %623 = vmatmul.mubr.f32.gmra.mrb[0].mxu0 %v622
    %v624 = vpop.f32.mrb[0].mxu0
    %v625 = vadd.f32 %v453, %v624
    %v626 = vpop.f32.mrb[0].mxu0
    %627 = vmatprep.mubr.f32.mxu0 0.0
    %v628 = vand.u32 %v82, 4294901760
    %v629 = vsub.f32 %v82, %v628
    %630 = vmatmul.mubr.f32.gmra.mrb[0].mxu0 %v629
    %v631 = vpop.f32.mrb[0].mxu0
    %v632 = vadd.f32 %v459, %v631
    %v633 = vpop.f32.mrb[0].mxu0
    %634 = vmatprep.mubr.f32.mxu0 0.0
    %v635 = vand.u32 %v85, 4294901760
    %v636 = vsub.f32 %v85, %v635
    %637 = vmatmul.mubr.f32.gmra.mrb[0].mxu0 %v636
    %v638 = vpop.f32.mrb[0].mxu0
    %v639 = vadd.f32 %v465, %v638
    %v640 = vpop.f32.mrb[0].mxu0
    %641 = vmatprep.mubr.f32.mxu0 0.0
    %v642 = vand.u32 %v88, 4294901760
    %v643 = vsub.f32 %v88, %v642
    %644 = vmatmul.mubr.f32.gmra.mrb[0].mxu0 %v643
    %v645 = vpop.f32.mrb[0].mxu0
    %v646 = vadd.f32 %v471, %v645
    %v647 = vpop.f32.mrb[0].mxu0
    %648 = vmatprep.mubr.f32.mxu0 0.0
    %v649 = vand.u32 %v91, 4294901760
    %v650 = vsub.f32 %v91, %v649
    %651 = vmatmul.mubr.f32.gmra.mrb[0].mxu0 %v650
    %v652 = vpop.f32.mrb[0].mxu0
    %v653 = vadd.f32 %v477, %v652
    %v654 = vpop.f32.mrb[0].mxu0
    %655 = vmatprep.mubr.f32.mxu0 0.0
    %v656 = vand.u32 %v94, 4294901760
    %v657 = vsub.f32 %v94, %v656
    %658 = vmatmul.mubr.f32.gmra.mrb[0].mxu0 %v657
    %v659 = vpop.f32.mrb[0].mxu0
    %v660 = vadd.f32 %v483, %v659
    %v661 = vpop.f32.mrb[0].mxu0
    %662 = vmatprep.mubr.f32.mxu0 0.0
    %v663 = vand.u32 %v97, 4294901760
    %v664 = vsub.f32 %v97, %v663
    %665 = vmatmul.mubr.f32.gmra.mrb[0].mxu0 %v664
    %v666 = vpop.f32.mrb[0].mxu0
    %v667 = vadd.f32 %v489, %v666
    %v668 = vpop.f32.mrb[0].mxu0
    %669 = vmatprep.mubr.f32.mxu0 0.0
    %v670 = vand.u32 %v100, 4294901760
    %v671 = vsub.f32 %v100, %v670
    %672 = vmatmul.mubr.f32.gmra.mrb[0].mxu0 %v671
    %v673 = vpop.f32.mrb[0].mxu0
    %v674 = vadd.f32 %v495, %v673
    %v675 = vpop.f32.mrb[0].mxu0
    %676 = vdwg.mxu0
    %677 = vmatprep.subr.mxu0 0.0
    %v678 = vand.u32 %v104, 4294901760
    %679 = vmatpush1.msra.mxu0 %v678
    %680 = vmatprep.subr.mxu0 0.0
    %681 = vmatpush1.msra.mxu0 0.0
    %682 = vmatprep.subr.mxu0 0.0
    %683 = vmatpush1.msra.mxu0 0.0
    %684 = vmatprep.subr.mxu0 0.0
    %685 = vmatpush1.msra.mxu0 0.0
    %686 = vmatprep.subr.mxu0 0.0
    %687 = vmatpush1.msra.mxu0 0.0
    %688 = vmatprep.subr.mxu0 0.0
    %689 = vmatpush1.msra.mxu0 0.0
    %690 = vmatprep.subr.mxu0 0.0
    %691 = vmatpush1.msra.mxu0 0.0
    %692 = vmatprep.subr.mxu0 0.0
    %693 = vmatpush1.msra.mxu0 0.0
    %694 = vmatprep.subr.mxu0 0.0
    %695 = vmatpush1.msra.mxu0 0.0
    %696 = vmatprep.subr.mxu0 0.0
    %697 = vmatpush1.msra.mxu0 0.0
    %698 = vmatprep.subr.mxu0 0.0
    %699 = vmatpush1.msra.mxu0 0.0
    %700 = vmatprep.subr.mxu0 0.0
    %701 = vmatpush1.msra.mxu0 0.0
    %702 = vmatprep.subr.mxu0 0.0
    %703 = vmatpush1.msra.mxu0 0.0
    %704 = vmatprep.subr.mxu0 0.0
    %705 = vmatpush1.msra.mxu0 0.0
    %706 = vmatprep.subr.mxu0 0.0
    %707 = vmatpush1.msra.mxu0 0.0
    %708 = vmatprep.subr.mxu0 0.0
    %709 = vmatpush1.msra.mxu0 0.0
    %710 = vmatprep.subr.mxu0 0.0
    %711 = vmatpush1.msra.mxu0 0.0
    %712 = vmatprep.subr.mxu0 0.0
    %713 = vmatpush1.msra.mxu0 0.0
    %714 = vmatprep.subr.mxu0 0.0
    %715 = vmatpush1.msra.mxu0 0.0
    %716 = vmatprep.subr.mxu0 0.0
    %717 = vmatpush1.msra.mxu0 0.0
    %718 = vmatprep.subr.mxu0 0.0
    %719 = vmatpush1.msra.mxu0 0.0
    %720 = vmatprep.subr.mxu0 0.0
    %721 = vmatpush1.msra.mxu0 0.0
    %722 = vmatprep.subr.mxu0 0.0
    %723 = vmatpush1.msra.mxu0 0.0
    %724 = vmatprep.subr.mxu0 0.0
    %725 = vmatpush1.msra.mxu0 0.0
    %726 = vmatprep.subr.mxu0 0.0
    %727 = vmatpush1.msra.mxu0 0.0
    %728 = vmatprep.subr.mxu0 0.0
    %729 = vmatpush1.msra.mxu0 0.0
    %730 = vmatprep.subr.mxu0 0.0
    %731 = vmatpush1.msra.mxu0 0.0
    %732 = vmatprep.subr.mxu0 0.0
    %733 = vmatpush1.msra.mxu0 0.0
    %734 = vmatprep.subr.mxu0 0.0
    %735 = vmatpush1.msra.mxu0 0.0
    %736 = vmatprep.subr.mxu0 0.0
    %737 = vmatpush1.msra.mxu0 0.0
    %738 = vmatprep.subr.mxu0 0.0
    %739 = vmatpush1.msra.mxu0 0.0
    %740 = vmatprep.subr.mxu0 0.0
    %741 = vmatpush1.msra.mxu0 0.0
    %742 = vmatprep.mubr.f32.mxu0 0.0
    %v743 = vand.u32 %v55, 4294901760
    %v744 = vsub.f32 %v55, %v743
    %v745 = vand.u32 %v744, 4294901760
    %746 = vmatmul.mubr.f32.gmra.mrb[0].mxu0 %v745
    %v747 = vpop.f32.mrb[0].mxu0
    %v748 = vadd.f32 %v569, %v747
    %v749 = vpop.f32.mrb[0].mxu0
    %750 = vmatprep.mubr.f32.mxu0 0.0
    %v751 = vand.u32 %v58, 4294901760
    %v752 = vsub.f32 %v58, %v751
    %v753 = vand.u32 %v752, 4294901760
    %754 = vmatmul.mubr.f32.gmra.mrb[0].mxu0 %v753
    %v755 = vpop.f32.mrb[0].mxu0
    %v756 = vadd.f32 %v576, %v755
    %v757 = vpop.f32.mrb[0].mxu0
    %758 = vmatprep.mubr.f32.mxu0 0.0
    %v759 = vand.u32 %v61, 4294901760
    %v760 = vsub.f32 %v61, %v759
    %v761 = vand.u32 %v760, 4294901760
    %762 = vmatmul.mubr.f32.gmra.mrb[0].mxu0 %v761
    %v763 = vpop.f32.mrb[0].mxu0
    %v764 = vadd.f32 %v583, %v763
    %v765 = vpop.f32.mrb[0].mxu0
    %766 = vmatprep.mubr.f32.mxu0 0.0
    %v767 = vand.u32 %v64, 4294901760
    %v768 = vsub.f32 %v64, %v767
    %v769 = vand.u32 %v768, 4294901760
    %770 = vmatmul.mubr.f32.gmra.mrb[0].mxu0 %v769
    %v771 = vpop.f32.mrb[0].mxu0
    %v772 = vadd.f32 %v590, %v771
    %v773 = vpop.f32.mrb[0].mxu0
    %774 = vmatprep.mubr.f32.mxu0 0.0
    %v775 = vand.u32 %v67, 4294901760
    %v776 = vsub.f32 %v67, %v775
    %v777 = vand.u32 %v776, 4294901760
    %778 = vmatmul.mubr.f32.gmra.mrb[0].mxu0 %v777
    %v779 = vpop.f32.mrb[0].mxu0
    %v780 = vadd.f32 %v597, %v779
    %v781 = vpop.f32.mrb[0].mxu0
    %782 = vmatprep.mubr.f32.mxu0 0.0
    %v783 = vand.u32 %v70, 4294901760
    %v784 = vsub.f32 %v70, %v783
    %v785 = vand.u32 %v784, 4294901760
    %786 = vmatmul.mubr.f32.gmra.mrb[0].mxu0 %v785
    %v787 = vpop.f32.mrb[0].mxu0
    %v788 = vadd.f32 %v604, %v787
    %v789 = vpop.f32.mrb[0].mxu0
    %790 = vmatprep.mubr.f32.mxu0 0.0
    %v791 = vand.u32 %v73, 4294901760
    %v792 = vsub.f32 %v73, %v791
    %v793 = vand.u32 %v792, 4294901760
    %794 = vmatmul.mubr.f32.gmra.mrb[0].mxu0 %v793
    %v795 = vpop.f32.mrb[0].mxu0
    %v796 = vadd.f32 %v611, %v795
    %v797 = vpop.f32.mrb[0].mxu0
    %798 = vmatprep.mubr.f32.mxu0 0.0
    %v799 = vand.u32 %v76, 4294901760
    %v800 = vsub.f32 %v76, %v799
    %v801 = vand.u32 %v800, 4294901760
    %802 = vmatmul.mubr.f32.gmra.mrb[0].mxu0 %v801
    %v803 = vpop.f32.mrb[0].mxu0
    %v804 = vadd.f32 %v618, %v803
    %v805 = vpop.f32.mrb[0].mxu0
    %806 = vmatprep.mubr.f32.mxu0 0.0
    %v807 = vand.u32 %v79, 4294901760
    %v808 = vsub.f32 %v79, %v807
    %v809 = vand.u32 %v808, 4294901760
    %810 = vmatmul.mubr.f32.gmra.mrb[0].mxu0 %v809
    %v811 = vpop.f32.mrb[0].mxu0
    %v812 = vadd.f32 %v625, %v811
    %v813 = vpop.f32.mrb[0].mxu0
    %814 = vmatprep.mubr.f32.mxu0 0.0
    %v815 = vand.u32 %v82, 4294901760
    %v816 = vsub.f32 %v82, %v815
    %v817 = vand.u32 %v816, 4294901760
    %818 = vmatmul.mubr.f32.gmra.mrb[0].mxu0 %v817
    %v819 = vpop.f32.mrb[0].mxu0
    %v820 = vadd.f32 %v632, %v819
    %v821 = vpop.f32.mrb[0].mxu0
    %822 = vmatprep.mubr.f32.mxu0 0.0
    %v823 = vand.u32 %v85, 4294901760
    %v824 = vsub.f32 %v85, %v823
    %v825 = vand.u32 %v824, 4294901760
    %826 = vmatmul.mubr.f32.gmra.mrb[0].mxu0 %v825
    %v827 = vpop.f32.mrb[0].mxu0
    %v828 = vadd.f32 %v639, %v827
    %v829 = vpop.f32.mrb[0].mxu0
    %830 = vmatprep.mubr.f32.mxu0 0.0
    %v831 = vand.u32 %v88, 4294901760
    %v832 = vsub.f32 %v88, %v831
    %v833 = vand.u32 %v832, 4294901760
    %834 = vmatmul.mubr.f32.gmra.mrb[0].mxu0 %v833
    %v835 = vpop.f32.mrb[0].mxu0
    %v836 = vadd.f32 %v646, %v835
    %v837 = vpop.f32.mrb[0].mxu0
    %838 = vmatprep.mubr.f32.mxu0 0.0
    %v839 = vand.u32 %v91, 4294901760
    %v840 = vsub.f32 %v91, %v839
    %v841 = vand.u32 %v840, 4294901760
    %842 = vmatmul.mubr.f32.gmra.mrb[0].mxu0 %v841
    %v843 = vpop.f32.mrb[0].mxu0
    %v844 = vadd.f32 %v653, %v843
    %v845 = vpop.f32.mrb[0].mxu0
    %846 = vmatprep.mubr.f32.mxu0 0.0
    %v847 = vand.u32 %v94, 4294901760
    %v848 = vsub.f32 %v94, %v847
    %v849 = vand.u32 %v848, 4294901760
    %850 = vmatmul.mubr.f32.gmra.mrb[0].mxu0 %v849
    %v851 = vpop.f32.mrb[0].mxu0
    %v852 = vadd.f32 %v660, %v851
    %v853 = vpop.f32.mrb[0].mxu0
    %854 = vmatprep.mubr.f32.mxu0 0.0
    %v855 = vand.u32 %v97, 4294901760
    %v856 = vsub.f32 %v97, %v855
    %v857 = vand.u32 %v856, 4294901760
    %858 = vmatmul.mubr.f32.gmra.mrb[0].mxu0 %v857
    %v859 = vpop.f32.mrb[0].mxu0
    %v860 = vadd.f32 %v667, %v859
    %v861 = vpop.f32.mrb[0].mxu0
    %862 = vmatprep.mubr.f32.mxu0 0.0
    %v863 = vand.u32 %v100, 4294901760
    %v864 = vsub.f32 %v100, %v863
    %v865 = vand.u32 %v864, 4294901760
    %866 = vmatmul.mubr.f32.gmra.mrb[0].mxu0 %v865
    %v867 = vpop.f32.mrb[0].mxu0
    %v868 = vadd.f32 %v674, %v867
    %v869 = vpop.f32.mrb[0].mxu0
    %870 = vdwg.mxu0
    %871 = vmatprep.subr.mxu0 0.0
    %v872 = vand.u32 %v104, 4294901760
    %v873 = vsub.f32 %v104, %v872
    %v874 = vand.u32 %v873, 4294901760
    %875 = vmatpush1.msra.mxu0 %v874
    %876 = vmatprep.subr.mxu0 0.0
    %877 = vmatpush1.msra.mxu0 0.0
    %878 = vmatprep.subr.mxu0 0.0
    %879 = vmatpush1.msra.mxu0 0.0
    %880 = vmatprep.subr.mxu0 0.0
    %881 = vmatpush1.msra.mxu0 0.0
    %882 = vmatprep.subr.mxu0 0.0
    %883 = vmatpush1.msra.mxu0 0.0
    %884 = vmatprep.subr.mxu0 0.0
    %885 = vmatpush1.msra.mxu0 0.0
    %886 = vmatprep.subr.mxu0 0.0
    %887 = vmatpush1.msra.mxu0 0.0
    %888 = vmatprep.subr.mxu0 0.0
    %889 = vmatpush1.msra.mxu0 0.0
    %890 = vmatprep.subr.mxu0 0.0
    %891 = vmatpush1.msra.mxu0 0.0
    %892 = vmatprep.subr.mxu0 0.0
    %893 = vmatpush1.msra.mxu0 0.0
    %894 = vmatprep.subr.mxu0 0.0
    %895 = vmatpush1.msra.mxu0 0.0
    %896 = vmatprep.subr.mxu0 0.0
    %897 = vmatpush1.msra.mxu0 0.0
    %898 = vmatprep.subr.mxu0 0.0
    %899 = vmatpush1.msra.mxu0 0.0
    %900 = vmatprep.subr.mxu0 0.0
    %901 = vmatpush1.msra.mxu0 0.0
    %902 = vmatprep.subr.mxu0 0.0
    %903 = vmatpush1.msra.mxu0 0.0
    %904 = vmatprep.subr.mxu0 0.0
    %905 = vmatpush1.msra.mxu0 0.0
    %906 = vmatprep.subr.mxu0 0.0
    %907 = vmatpush1.msra.mxu0 0.0
    %908 = vmatprep.subr.mxu0 0.0
    %909 = vmatpush1.msra.mxu0 0.0
    %910 = vmatprep.subr.mxu0 0.0
    %911 = vmatpush1.msra.mxu0 0.0
    %912 = vmatprep.subr.mxu0 0.0
    %913 = vmatpush1.msra.mxu0 0.0
    %914 = vmatprep.subr.mxu0 0.0
    %915 = vmatpush1.msra.mxu0 0.0
    %916 = vmatprep.subr.mxu0 0.0
    %917 = vmatpush1.msra.mxu0 0.0
    %918 = vmatprep.subr.mxu0 0.0
    %919 = vmatpush1.msra.mxu0 0.0
    %920 = vmatprep.subr.mxu0 0.0
    %921 = vmatpush1.msra.mxu0 0.0
    %922 = vmatprep.subr.mxu0 0.0
    %923 = vmatpush1.msra.mxu0 0.0
    %924 = vmatprep.subr.mxu0 0.0
    %925 = vmatpush1.msra.mxu0 0.0
    %926 = vmatprep.subr.mxu0 0.0
    %927 = vmatpush1.msra.mxu0 0.0
    %928 = vmatprep.subr.mxu0 0.0
    %929 = vmatpush1.msra.mxu0 0.0
    %930 = vmatprep.subr.mxu0 0.0
    %931 = vmatpush1.msra.mxu0 0.0
    %932 = vmatprep.subr.mxu0 0.0
    %933 = vmatpush1.msra.mxu0 0.0
    %934 = vmatprep.subr.mxu0 0.0
    %935 = vmatpush1.msra.mxu0 0.0
    %936 = vmatprep.subr.mxu0 0.0
    %937 = vmatpush1.msra.mxu0 0.0
    %938 = vmatprep.mubr.f32.mxu0 0.0
    %v939 = vand.u32 %v55, 4294901760
    %940 = vmatmul.mubr.f32.gmra.mrb[0].mxu0 %v939
    %v941 = vpop.f32.mrb[0].mxu0
    %v942 = vadd.f32 %v748, %v941
    %v943 = vpop.f32.mrb[0].mxu0
    %944 = vmatprep.mubr.f32.mxu0 0.0
    %v945 = vand.u32 %v58, 4294901760
    %946 = vmatmul.mubr.f32.gmra.mrb[0].mxu0 %v945
    %v947 = vpop.f32.mrb[0].mxu0
    %v948 = vadd.f32 %v756, %v947
    %v949 = vpop.f32.mrb[0].mxu0
    %950 = vmatprep.mubr.f32.mxu0 0.0
    %v951 = vand.u32 %v61, 4294901760
    %952 = vmatmul.mubr.f32.gmra.mrb[0].mxu0 %v951
    %v953 = vpop.f32.mrb[0].mxu0
    %v954 = vadd.f32 %v764, %v953
    %v955 = vpop.f32.mrb[0].mxu0
    %956 = vmatprep.mubr.f32.mxu0 0.0
    %v957 = vand.u32 %v64, 4294901760
    %958 = vmatmul.mubr.f32.gmra.mrb[0].mxu0 %v957
    %v959 = vpop.f32.mrb[0].mxu0
    %v960 = vadd.f32 %v772, %v959
    %v961 = vpop.f32.mrb[0].mxu0
    %962 = vmatprep.mubr.f32.mxu0 0.0
    %v963 = vand.u32 %v67, 4294901760
    %964 = vmatmul.mubr.f32.gmra.mrb[0].mxu0 %v963
    %v965 = vpop.f32.mrb[0].mxu0
    %v966 = vadd.f32 %v780, %v965
    %v967 = vpop.f32.mrb[0].mxu0
    %968 = vmatprep.mubr.f32.mxu0 0.0
    %v969 = vand.u32 %v70, 4294901760
    %970 = vmatmul.mubr.f32.gmra.mrb[0].mxu0 %v969
    %v971 = vpop.f32.mrb[0].mxu0
    %v972 = vadd.f32 %v788, %v971
    %v973 = vpop.f32.mrb[0].mxu0
    %974 = vmatprep.mubr.f32.mxu0 0.0
    %v975 = vand.u32 %v73, 4294901760
    %976 = vmatmul.mubr.f32.gmra.mrb[0].mxu0 %v975
    %v977 = vpop.f32.mrb[0].mxu0
    %v978 = vadd.f32 %v796, %v977
    %v979 = vpop.f32.mrb[0].mxu0
    %980 = vmatprep.mubr.f32.mxu0 0.0
    %v981 = vand.u32 %v76, 4294901760
    %982 = vmatmul.mubr.f32.gmra.mrb[0].mxu0 %v981
    %v983 = vpop.f32.mrb[0].mxu0
    %v984 = vadd.f32 %v804, %v983
    %v985 = vpop.f32.mrb[0].mxu0
    %986 = vmatprep.mubr.f32.mxu0 0.0
    %v987 = vand.u32 %v79, 4294901760
    %988 = vmatmul.mubr.f32.gmra.mrb[0].mxu0 %v987
    %v989 = vpop.f32.mrb[0].mxu0
    %v990 = vadd.f32 %v812, %v989
    %v991 = vpop.f32.mrb[0].mxu0
    %992 = vmatprep.mubr.f32.mxu0 0.0
    %v993 = vand.u32 %v82, 4294901760
    %994 = vmatmul.mubr.f32.gmra.mrb[0].mxu0 %v993
    %v995 = vpop.f32.mrb[0].mxu0
    %v996 = vadd.f32 %v820, %v995
    %v997 = vpop.f32.mrb[0].mxu0
    %998 = vmatprep.mubr.f32.mxu0 0.0
    %v999 = vand.u32 %v85, 4294901760
    %1000 = vmatmul.mubr.f32.gmra.mrb[0].mxu0 %v999
    %v1001 = vpop.f32.mrb[0].mxu0
    %v1002 = vadd.f32 %v828, %v1001
    %v1003 = vpop.f32.mrb[0].mxu0
    %1004 = vmatprep.mubr.f32.mxu0 0.0
    %v1005 = vand.u32 %v88, 4294901760
    %1006 = vmatmul.mubr.f32.gmra.mrb[0].mxu0 %v1005
    %v1007 = vpop.f32.mrb[0].mxu0
    %v1008 = vadd.f32 %v836, %v1007
    %v1009 = vpop.f32.mrb[0].mxu0
    %1010 = vmatprep.mubr.f32.mxu0 0.0
    %v1011 = vand.u32 %v91, 4294901760
    %1012 = vmatmul.mubr.f32.gmra.mrb[0].mxu0 %v1011
    %v1013 = vpop.f32.mrb[0].mxu0
    %v1014 = vadd.f32 %v844, %v1013
    %v1015 = vpop.f32.mrb[0].mxu0
    %1016 = vmatprep.mubr.f32.mxu0 0.0
    %v1017 = vand.u32 %v94, 4294901760
    %1018 = vmatmul.mubr.f32.gmra.mrb[0].mxu0 %v1017
    %v1019 = vpop.f32.mrb[0].mxu0
    %v1020 = vadd.f32 %v852, %v1019
    %v1021 = vpop.f32.mrb[0].mxu0
    %1022 = vmatprep.mubr.f32.mxu0 0.0
    %v1023 = vand.u32 %v97, 4294901760
    %1024 = vmatmul.mubr.f32.gmra.mrb[0].mxu0 %v1023
    %v1025 = vpop.f32.mrb[0].mxu0
    %v1026 = vadd.f32 %v860, %v1025
    %v1027 = vpop.f32.mrb[0].mxu0
    %1028 = vmatprep.mubr.f32.mxu0 0.0
    %v1029 = vand.u32 %v100, 4294901760
    %1030 = vmatmul.mubr.f32.gmra.mrb[0].mxu0 %v1029
    %v1031 = vpop.f32.mrb[0].mxu0
    %v1032 = vadd.f32 %v868, %v1031
    %v1033 = vpop.f32.mrb[0].mxu0
    %1034 = vdwg.mxu0
    %1035 = vmatprep.subr.mxu0 0.0
    %v1036 = vand.u32 %v104, 4294901760
    %1037 = vmatpush1.msra.mxu0 %v1036
    %1038 = vmatprep.subr.mxu0 0.0
    %1039 = vmatpush1.msra.mxu0 0.0
    %1040 = vmatprep.subr.mxu0 0.0
    %1041 = vmatpush1.msra.mxu0 0.0
    %1042 = vmatprep.subr.mxu0 0.0
    %1043 = vmatpush1.msra.mxu0 0.0
    %1044 = vmatprep.subr.mxu0 0.0
    %1045 = vmatpush1.msra.mxu0 0.0
    %1046 = vmatprep.subr.mxu0 0.0
    %1047 = vmatpush1.msra.mxu0 0.0
    %1048 = vmatprep.subr.mxu0 0.0
    %1049 = vmatpush1.msra.mxu0 0.0
    %1050 = vmatprep.subr.mxu0 0.0
    %1051 = vmatpush1.msra.mxu0 0.0
    %1052 = vmatprep.subr.mxu0 0.0
    %1053 = vmatpush1.msra.mxu0 0.0
    %1054 = vmatprep.subr.mxu0 0.0
    %1055 = vmatpush1.msra.mxu0 0.0
    %1056 = vmatprep.subr.mxu0 0.0
    %1057 = vmatpush1.msra.mxu0 0.0
    %1058 = vmatprep.subr.mxu0 0.0
    %1059 = vmatpush1.msra.mxu0 0.0
    %1060 = vmatprep.subr.mxu0 0.0
    %1061 = vmatpush1.msra.mxu0 0.0
    %1062 = vmatprep.subr.mxu0 0.0
    %1063 = vmatpush1.msra.mxu0 0.0
    %1064 = vmatprep.subr.mxu0 0.0
    %1065 = vmatpush1.msra.mxu0 0.0
    %1066 = vmatprep.subr.mxu0 0.0
    %1067 = vmatpush1.msra.mxu0 0.0
    %1068 = vmatprep.subr.mxu0 0.0
    %1069 = vmatpush1.msra.mxu0 0.0
    %1070 = vmatprep.subr.mxu0 0.0
    %1071 = vmatpush1.msra.mxu0 0.0
    %1072 = vmatprep.subr.mxu0 0.0
    %1073 = vmatpush1.msra.mxu0 0.0
    %1074 = vmatprep.subr.mxu0 0.0
    %1075 = vmatpush1.msra.mxu0 0.0
    %1076 = vmatprep.subr.mxu0 0.0
    %1077 = vmatpush1.msra.mxu0 0.0
    %1078 = vmatprep.subr.mxu0 0.0
    %1079 = vmatpush1.msra.mxu0 0.0
    %1080 = vmatprep.subr.mxu0 0.0
    %1081 = vmatpush1.msra.mxu0 0.0
    %1082 = vmatprep.subr.mxu0 0.0
    %1083 = vmatpush1.msra.mxu0 0.0
    %1084 = vmatprep.subr.mxu0 0.0
    %1085 = vmatpush1.msra.mxu0 0.0
    %1086 = vmatprep.subr.mxu0 0.0
    %1087 = vmatpush1.msra.mxu0 0.0
    %1088 = vmatprep.subr.mxu0 0.0
    %1089 = vmatpush1.msra.mxu0 0.0
    %1090 = vmatprep.subr.mxu0 0.0
    %1091 = vmatpush1.msra.mxu0 0.0
    %1092 = vmatprep.subr.mxu0 0.0
    %1093 = vmatpush1.msra.mxu0 0.0
    %1094 = vmatprep.subr.mxu0 0.0
    %1095 = vmatpush1.msra.mxu0 0.0
    %1096 = vmatprep.subr.mxu0 0.0
    %1097 = vmatpush1.msra.mxu0 0.0
    %1098 = vmatprep.subr.mxu0 0.0
    %1099 = vmatpush1.msra.mxu0 0.0
    %1100 = vmatprep.mubr.f32.mxu0 0.0
    %v1101 = vand.u32 %v55, 4294901760
    %1102 = vmatmul.mubr.f32.gmra.mrb[0].mxu0 %v1101
    %v1103 = vpop.f32.mrb[0].mxu0
    %v1104 = vadd.f32 %v942, %v1103
    %v1105 = vpop.f32.mrb[0].mxu0
    %1106 = vmatprep.mubr.f32.mxu0 0.0
    %v1107 = vand.u32 %v58, 4294901760
    %1108 = vmatmul.mubr.f32.gmra.mrb[0].mxu0 %v1107
    %v1109 = vpop.f32.mrb[0].mxu0
    %v1110 = vadd.f32 %v948, %v1109
    %v1111 = vpop.f32.mrb[0].mxu0
    %1112 = vmatprep.mubr.f32.mxu0 0.0
    %v1113 = vand.u32 %v61, 4294901760
    %1114 = vmatmul.mubr.f32.gmra.mrb[0].mxu0 %v1113
    %v1115 = vpop.f32.mrb[0].mxu0
    %v1116 = vadd.f32 %v954, %v1115
    %v1117 = vpop.f32.mrb[0].mxu0
    %1118 = vmatprep.mubr.f32.mxu0 0.0
    %v1119 = vand.u32 %v64, 4294901760
    %1120 = vmatmul.mubr.f32.gmra.mrb[0].mxu0 %v1119
    %v1121 = vpop.f32.mrb[0].mxu0
    %v1122 = vadd.f32 %v960, %v1121
    %v1123 = vpop.f32.mrb[0].mxu0
    %1124 = vmatprep.mubr.f32.mxu0 0.0
    %v1125 = vand.u32 %v67, 4294901760
    %1126 = vmatmul.mubr.f32.gmra.mrb[0].mxu0 %v1125
    %v1127 = vpop.f32.mrb[0].mxu0
    %v1128 = vadd.f32 %v966, %v1127
    %v1129 = vpop.f32.mrb[0].mxu0
    %1130 = vmatprep.mubr.f32.mxu0 0.0
    %v1131 = vand.u32 %v70, 4294901760
    %1132 = vmatmul.mubr.f32.gmra.mrb[0].mxu0 %v1131
    %v1133 = vpop.f32.mrb[0].mxu0
    %v1134 = vadd.f32 %v972, %v1133
    %v1135 = vpop.f32.mrb[0].mxu0
    %1136 = vmatprep.mubr.f32.mxu0 0.0
    %v1137 = vand.u32 %v73, 4294901760
    %1138 = vmatmul.mubr.f32.gmra.mrb[0].mxu0 %v1137
    %v1139 = vpop.f32.mrb[0].mxu0
    %v1140 = vadd.f32 %v978, %v1139
    %v1141 = vpop.f32.mrb[0].mxu0
    %1142 = vmatprep.mubr.f32.mxu0 0.0
    %v1143 = vand.u32 %v76, 4294901760
    %1144 = vmatmul.mubr.f32.gmra.mrb[0].mxu0 %v1143
    %v1145 = vpop.f32.mrb[0].mxu0
    %v1146 = vadd.f32 %v984, %v1145
    %v1147 = vpop.f32.mrb[0].mxu0
    %1148 = vmatprep.mubr.f32.mxu0 0.0
    %v1149 = vand.u32 %v79, 4294901760
    %1150 = vmatmul.mubr.f32.gmra.mrb[0].mxu0 %v1149
    %v1151 = vpop.f32.mrb[0].mxu0
    %v1152 = vadd.f32 %v990, %v1151
    %v1153 = vpop.f32.mrb[0].mxu0
    %1154 = vmatprep.mubr.f32.mxu0 0.0
    %v1155 = vand.u32 %v82, 4294901760
    %1156 = vmatmul.mubr.f32.gmra.mrb[0].mxu0 %v1155
    %v1157 = vpop.f32.mrb[0].mxu0
    %v1158 = vadd.f32 %v996, %v1157
    %v1159 = vpop.f32.mrb[0].mxu0
    %1160 = vmatprep.mubr.f32.mxu0 0.0
    %v1161 = vand.u32 %v85, 4294901760
    %1162 = vmatmul.mubr.f32.gmra.mrb[0].mxu0 %v1161
    %v1163 = vpop.f32.mrb[0].mxu0
    %v1164 = vadd.f32 %v1002, %v1163
    %v1165 = vpop.f32.mrb[0].mxu0
    %1166 = vmatprep.mubr.f32.mxu0 0.0
    %v1167 = vand.u32 %v88, 4294901760
    %1168 = vmatmul.mubr.f32.gmra.mrb[0].mxu0 %v1167
    %v1169 = vpop.f32.mrb[0].mxu0
    %v1170 = vadd.f32 %v1008, %v1169
    %v1171 = vpop.f32.mrb[0].mxu0
    %1172 = vmatprep.mubr.f32.mxu0 0.0
    %v1173 = vand.u32 %v91, 4294901760
    %1174 = vmatmul.mubr.f32.gmra.mrb[0].mxu0 %v1173
    %v1175 = vpop.f32.mrb[0].mxu0
    %v1176 = vadd.f32 %v1014, %v1175
    %v1177 = vpop.f32.mrb[0].mxu0
    %1178 = vmatprep.mubr.f32.mxu0 0.0
    %v1179 = vand.u32 %v94, 4294901760
    %1180 = vmatmul.mubr.f32.gmra.mrb[0].mxu0 %v1179
    %v1181 = vpop.f32.mrb[0].mxu0
    %v1182 = vadd.f32 %v1020, %v1181
    %v1183 = vpop.f32.mrb[0].mxu0
    %1184 = vmatprep.mubr.f32.mxu0 0.0
    %v1185 = vand.u32 %v97, 4294901760
    %1186 = vmatmul.mubr.f32.gmra.mrb[0].mxu0 %v1185
    %v1187 = vpop.f32.mrb[0].mxu0
    %v1188 = vadd.f32 %v1026, %v1187
    %v1189 = vpop.f32.mrb[0].mxu0
    %1190 = vmatprep.mubr.f32.mxu0 0.0
    %v1191 = vand.u32 %v100, 4294901760
    %1192 = vmatmul.mubr.f32.gmra.mrb[0].mxu0 %v1191
    %v1193 = vpop.f32.mrb[0].mxu0
    %v1194 = vadd.f32 %v1032, %v1193
    %v1195 = vpop.f32.mrb[0].mxu0
    %1196 = vdwg.mxu0
    %v1197 = vmax.f32 %v1104, 0.0
    %v1198 = vmax.f32 %v1110, 0.0
    %v1199 = vmax.f32 %v1116, 0.0
    %v1200 = vmax.f32 %v1122, 0.0
    %v1201 = vmax.f32 %v1128, 0.0
    %v1202 = vmax.f32 %v1134, 0.0
    %v1203 = vmax.f32 %v1140, 0.0
    %v1204 = vmax.f32 %v1146, 0.0
    %v1205 = vmax.f32 %v1152, 0.0
    %v1206 = vmax.f32 %v1158, 0.0
    %v1207 = vmax.f32 %v1164, 0.0
    %v1208 = vmax.f32 %v1170, 0.0
    %v1209 = vmax.f32 %v1176, 0.0
    %v1210 = vmax.f32 %v1182, 0.0
    %v1211 = vmax.f32 %v1188, 0.0
    %v1212 = vmax.f32 %v1194, 0.0
    %v1213 = vmul.f32 %v1197, %v34
    %v1214 = vmul.f32 %v1198, %v34
    %v1215 = vmul.f32 %v1199, %v34
    %v1216 = vmul.f32 %v1200, %v34
    %v1217 = vmul.f32 %v1201, %v34
    %v1218 = vmul.f32 %v1202, %v34
    %v1219 = vmul.f32 %v1203, %v34
    %v1220 = vmul.f32 %v1204, %v34
    %v1221 = vmul.f32 %v1205, %v34
    %v1222 = vmul.f32 %v1206, %v34
    %v1223 = vmul.f32 %v1207, %v34
    %v1224 = vmul.f32 %v1208, %v34
    %v1225 = vmul.f32 %v1209, %v34
    %v1226 = vmul.f32 %v1210, %v34
    %v1227 = vmul.f32 %v1211, %v34
    %v1228 = vmul.f32 %v1212, %v34
    %vm1229 = vcmask 523264
    %v1230 = vsel %vm1229, %v1213, 0.0
    %1231 = vadd.xlane.f32.xlu0 %v1230
    %v1232 = vpop.xlane.xlu0 %1231
    %v1233 = vsel %vm1229, %v1214, 0.0
    %1234 = vadd.xlane.f32.xlu0 %v1233
    %v1235 = vpop.xlane.xlu0 %1234
    %v1236 = vsel %vm1229, %v1215, 0.0
    %1237 = vadd.xlane.f32.xlu0 %v1236
    %v1238 = vpop.xlane.xlu0 %1237
    %v1239 = vsel %vm1229, %v1216, 0.0
    %1240 = vadd.xlane.f32.xlu0 %v1239
    %v1241 = vpop.xlane.xlu0 %1240
    %v1242 = vsel %vm1229, %v1217, 0.0
    %1243 = vadd.xlane.f32.xlu0 %v1242
    %v1244 = vpop.xlane.xlu0 %1243
    %v1245 = vsel %vm1229, %v1218, 0.0
    %1246 = vadd.xlane.f32.xlu0 %v1245
    %v1247 = vpop.xlane.xlu0 %1246
    %v1248 = vsel %vm1229, %v1219, 0.0
    %1249 = vadd.xlane.f32.xlu0 %v1248
    %v1250 = vpop.xlane.xlu0 %1249
    %v1251 = vsel %vm1229, %v1220, 0.0
    %1252 = vadd.xlane.f32.xlu0 %v1251
    %v1253 = vpop.xlane.xlu0 %1252
    %v1254 = vsel %vm1229, %v1221, 0.0
    %1255 = vadd.xlane.f32.xlu0 %v1254
    %v1256 = vpop.xlane.xlu0 %1255
    %v1257 = vsel %vm1229, %v1222, 0.0
    %1258 = vadd.xlane.f32.xlu0 %v1257
    %v1259 = vpop.xlane.xlu0 %1258
    %v1260 = vsel %vm1229, %v1223, 0.0
    %1261 = vadd.xlane.f32.xlu0 %v1260
    %v1262 = vpop.xlane.xlu0 %1261
    %v1263 = vsel %vm1229, %v1224, 0.0
    %1264 = vadd.xlane.f32.xlu0 %v1263
    %v1265 = vpop.xlane.xlu0 %1264
    %v1266 = vsel %vm1229, %v1225, 0.0
    %1267 = vadd.xlane.f32.xlu0 %v1266
    %v1268 = vpop.xlane.xlu0 %1267
    %v1269 = vsel %vm1229, %v1226, 0.0
    %1270 = vadd.xlane.f32.xlu0 %v1269
    %v1271 = vpop.xlane.xlu0 %1270
    %v1272 = vsel %vm1229, %v1227, 0.0
    %1273 = vadd.xlane.f32.xlu0 %v1272
    %v1274 = vpop.xlane.xlu0 %1273
    %v1275 = vsel %vm1229, %v1228, 0.0
    %1276 = vadd.xlane.f32.xlu0 %v1275
    %v1277 = vpop.xlane.xlu0 %1276
    %v1278 = vstv %s36
    %v1279 = vadd.f32 %v1232, %v1278
    %v1280 = vadd.f32 %v1235, %v1278
    %v1281 = vadd.f32 %v1238, %v1278
    %v1282 = vadd.f32 %v1241, %v1278
    %v1283 = vadd.f32 %v1244, %v1278
    %v1284 = vadd.f32 %v1247, %v1278
    %v1285 = vadd.f32 %v1250, %v1278
    %v1286 = vadd.f32 %v1253, %v1278
    %v1287 = vadd.f32 %v1256, %v1278
    %v1288 = vadd.f32 %v1259, %v1278
    %v1289 = vadd.f32 %v1262, %v1278
    %v1290 = vadd.f32 %v1265, %v1278
    %v1291 = vadd.f32 %v1268, %v1278
    %v1292 = vadd.f32 %v1271, %v1278
    %v1293 = vadd.f32 %v1274, %v1278
    %v1294 = vadd.f32 %v1277, %v1278
    %vm1295 = vcmask 7168
    %1296 = vst.msk [vmem:[#allocation3] sm:$0xff] %vm1295, %v1279
    %1297 = vst.msk [vmem:[#allocation3 + $0x8] sm:$0xff] %vm1295, %v1280
    %1298 = vst.msk [vmem:[#allocation3 + $0x10] sm:$0xff] %vm1295, %v1281
    %1299 = vst.msk [vmem:[#allocation3 + $0x18] sm:$0xff] %vm1295, %v1282
    %1300 = vst.msk [vmem:[#allocation3 + $0x20] sm:$0xff] %vm1295, %v1283
    %1301 = vst.msk [vmem:[#allocation3 + $0x28] sm:$0xff] %vm1295, %v1284
    %1302 = vst.msk [vmem:[#allocation3 + $0x30] sm:$0xff] %vm1295, %v1285
    %1303 = vst.msk [vmem:[#allocation3 + $0x38] sm:$0xff] %vm1295, %v1286
    %1304 = vst.msk [vmem:[#allocation3 + $0x40] sm:$0xff] %vm1295, %v1287
    %1305 = vst.msk [vmem:[#allocation3 + $0x48] sm:$0xff] %vm1295, %v1288
    %1306 = vst.msk [vmem:[#allocation3 + $0x50] sm:$0xff] %vm1295, %v1289
    %1307 = vst.msk [vmem:[#allocation3 + $0x58] sm:$0xff] %vm1295, %v1290
    %1308 = vst.msk [vmem:[#allocation3 + $0x60] sm:$0xff] %vm1295, %v1291
    %1309 = vst.msk [vmem:[#allocation3 + $0x68] sm:$0xff] %vm1295, %v1292
    %1310 = vst.msk [vmem:[#allocation3 + $0x70] sm:$0xff] %vm1295, %v1293
    %1311 = vst.msk [vmem:[#allocation3 + $0x78] sm:$0xff] %vm1295, %v1294
    // Predicated region
    $region22: #{value_net_forward.1} parent=1 // pred_check
      _
    $region23: #{value_net_forward.1} parent=1 // pred_check_branch
      %1313 = sbr.rel (0) target = $region25
    $region24: #{value_net_forward.1} parent=1 // pred_region
      // Predicated region
      $region26: #{value_net_forward.1} parent=24 // pred_check
        _
      $region27: #{value_net_forward.1} parent=24 // pred_check_branch
        %1315 = sbr.rel (0) target = $region29
      $region28: #{value_net_forward.1} parent=24 // pred_region
        // Predicated region
        $region30: #{value_net_forward.1} parent=28 // pred_check
          _
        $region31: #{value_net_forward.1} parent=28 // pred_check_branch
          %1317 = sbr.rel (0) target = $region33
        $region32: #{value_net_forward.1} parent=28 // pred_region
          // Predicated region
          $region45: #{value_net_forward.1} parent=32 // pred_check
            _
          $region46: #{value_net_forward.1} parent=32 // pred_check_branch
            %1332 = sbr.rel (0) target = $region48
          $region47: #{value_net_forward.1} parent=32 // pred_region
            loop: start=0, step=1, limit=1
            $region49: #{value_net_forward.1} parent=47 // loop_pre_header
              _
            $region50: #{value_net_forward.1} parent=47 // loop_header
              %s1334 = sphi 0, %s1338
              %p1335 = scmp.ge.s32.totalorder %s1334, 1
              %s1339 = sphi [#allocation3], [#allocation3]
              %s1340 = sphi %s5, %s5
            $region51: #{value_net_forward.1} parent=47 // loop_header_branch
              %1337 = sbr.rel (%p1335) target = $region55
            $region52: #{value_net_forward.1} parent=47 // loop_body
              %v1341 = vld [vmem:[%s1339] sm:$0xff]
              %1342 = vst [vmem:[%s1340] sm:$0xff] %v1341
            $region53: #{value_net_forward.1} parent=47 // loop_footer
              %s1338 = sadd.s32 1, %s1334
            $region54: #{value_net_forward.1} parent=47 // loop_footer_branch
              %1333 = sbr.rel target = $region50
            $region55: #{value_net_forward.1} parent=47 // loop_exit
              _
          $region48: #{value_net_forward.1} parent=32 // pred_fallthru
            _
          // Predicated region
          $region56: #{value_net_forward.1} parent=32 // pred_check
            _
          $region57: #{value_net_forward.1} parent=32 // pred_check_branch
            %1344 = sbr.rel target = $region59
          $region58: #{value_net_forward.1} parent=32 // pred_region
            _
          $region59: #{value_net_forward.1} parent=32 // pred_fallthru
            _
        $region33: #{value_net_forward.1} parent=28 // pred_fallthru
          _
        // Predicated region
        $region34: #{value_net_forward.1} parent=28 // pred_check
          _
        $region35: #{value_net_forward.1} parent=28 // pred_check_branch
          %1319 = sbr.rel target = $region37
        $region36: #{value_net_forward.1} parent=28 // pred_region
          loop: start=0, step=1, limit=1
          $region38: #{value_net_forward.1} parent=36 // loop_pre_header
            _
          $region39: #{value_net_forward.1} parent=36 // loop_header
            %s1322 = sphi 0, %s1326
            %p1323 = scmp.ge.s32.totalorder %s1322, 1
            %s1327 = sphi [#allocation3], [#allocation3]
            %s1328 = sphi %s5, %s5
          $region40: #{value_net_forward.1} parent=36 // loop_header_branch
            %1325 = sbr.rel (%p1323) target = $region44
          $region41: #{value_net_forward.1} parent=36 // loop_body
            %v1329 = vld [vmem:[%s1327] sm:$0xff]
            %1330 = vst [vmem:[%s1328] sm:$0xff] %v1329
          $region42: #{value_net_forward.1} parent=36 // loop_footer
            %s1326 = sadd.s32 1, %s1322
          $region43: #{value_net_forward.1} parent=36 // loop_footer_branch
            %1321 = sbr.rel target = $region39
          $region44: #{value_net_forward.1} parent=36 // loop_exit
            _
        $region37: #{value_net_forward.1} parent=28 // pred_fallthru
          _
      $region29: #{value_net_forward.1} parent=24 // pred_fallthru
        _
      %1345 = vnop
    $region25: #{value_net_forward.1} parent=1 // pred_fallthru
      _
    // Predicated region
    $region60: #{value_net_forward.1} parent=1 // pred_check
      _
    $region61: #{value_net_forward.1} parent=1 // pred_check_branch
      %1347 = sbr.rel (0) target = $region63
    $region62: #{value_net_forward.1} parent=1 // pred_region
      _
    $region63: #{value_net_forward.1} parent=1 // pred_fallthru
      _

</llo_original>
